<compile_context>
chip_gen: v7x
topology: tpu7x:2x2x1
jax: 0.10.0
libtpu: 0.0.40
codegen_flags: <defaults>
</compile_context>

<pallas_src>
import math

import jax
import jax.numpy as jnp
from jax.experimental import pallas as pl
from jax.experimental.pallas import tpu as pltpu

# ---- ElucidatedDiffusion hyper-parameters (defaults from the module) ----
SIGMA_DATA = 0.5
P_MEAN = -1.2
P_STD = 1.2


def _gelu(x):
    # tanh-approx GELU (EUP-friendly); used both host-side and in-kernel.
    return 0.5 * x * (1.0 + jnp.tanh(0.7978845608028654 * (x + 0.044715 * x * x * x)))


def _pick_tile(n):
    """Lane-tile size: divides n, is a multiple of 128 (or n itself), <= 2048 lanes."""
    if n <= 2048:
        return n
    for tn in (2048, 1024, 512, 256, 128):
        if n % tn == 0:
            return tn
    return n  # fallback: single block


def make_kernel(C, HID, TN):
    """Fused noising + preconditioned-net + weighted-MSE kernel over one (b, tile)."""

    def kernel(coef_ref, img_ref, noise_ref, tembb_ref, wc1t_ref, wc2_ref, bc2_ref,
               out_ref, acc_ref):
        b = pl.program_id(0)
        t = pl.program_id(1)
        nt = pl.num_programs(1)

        @pl.when(t == 0)
        def _zero():
            acc_ref[...] = jnp.zeros_like(acc_ref)

        # per-batch scalars via SMEM (scalar path is essentially free)
        c_in = coef_ref[b, 0]
        c_skip = coef_ref[b, 1]
        c_out = coef_ref[b, 2]
        sigma = coef_ref[b, 3]

        # normalize_neg_one_to_one
        img = img_ref[0] * 2.0 - 1.0                        # (C, TN)

        noise = noise_ref[0]                                # (C, TN), N(0,1) from host
        noised = img + sigma * noise                        # images + padded_sigma * noise
        x = c_in * noised                                   # net-input preconditioning

        # ---- synthetic net: two pointwise convs on the VPU (channels too small for MXU)
        # conv1: C -> HID, h[k,:] = temb[k] + bc1[k] + sum_c wc1[c,k] * x[c,:]
        h = jnp.broadcast_to(tembb_ref[0], (HID, TN))       # (HID, TN), temb already + bc1
        for c in range(C):                                  # static unroll, C is tiny
            h = h + wc1t_ref[:, c:c + 1] * x[c:c + 1, :]
        h = _gelu(h)
        # conv2: HID -> C, y[c,:] = bc2[c] + sum_k wc2[k,c] * h[k,:]  (sublane reduce, XLU)
        rows = [jnp.sum(wc2_ref[:, c:c + 1] * h, axis=0, keepdims=True) for c in range(C)]
        y = jnp.concatenate(rows, axis=0) + bc2_ref[...]    # (C, TN)

        # preconditioned output (clamp=False in the training forward)
        denoised = c_skip * noised + c_out * y
        diff = denoised - img
        acc_ref[...] += jnp.sum(diff * diff, keepdims=True)  # tile SSE -> (1,1) accumulator

        @pl.when(t == nt - 1)
        def _finalize():
            # coef[:, 4] = loss_weight(sigma) / (C*H*W)  (folds the per-batch mean)
            wl = coef_ref[b, 4]
            val = (acc_ref[...] * wl).reshape(1, 1, 1)
            out_ref[...] = jnp.broadcast_to(val, out_ref.shape)

    return kernel


def init_net_params(key, C, HID=32, NFREQ=8):
    """Deterministic synthetic-net parameters."""
    ks = jax.random.split(key, 5)
    fdim = 2 * NFREQ + 1
    s = 0.02
    return {
        "wf":  jax.random.normal(ks[0], (1, NFREQ), jnp.float32),       # learned sinusoidal freqs
        "wt1": s * jax.random.normal(ks[1], (fdim, HID), jnp.float32),  # time MLP
        "bt1": jnp.zeros((1, HID), jnp.float32),
        "wt2": s * jax.random.normal(ks[2], (HID, HID), jnp.float32),
        "bt2": jnp.zeros((1, HID), jnp.float32),
        "wc1": s * jax.random.normal(ks[3], (C, HID), jnp.float32),     # 1x1 conv in
        "bc1": jnp.zeros((1, HID), jnp.float32),
        "wc2": s * jax.random.normal(ks[4], (HID, C), jnp.float32),     # 1x1 conv out
        "bc2": jnp.zeros((1, C), jnp.float32),
    }


def elucidated_diffusion_forward(images_nchw, key, params):
    """Equivalent of ElucidatedDiffusion.forward(images) -> scalar loss."""
    B, C, H, W = images_nchw.shape
    N = H * W
    HID = params["wc1"].shape[1]

    k_sig, k_noise = jax.random.split(key)

    # ---- O(B) host-side precompute: sigma draws, preconditioners, time MLP ----
    sigmas = jnp.exp(P_MEAN + P_STD * jax.random.normal(k_sig, (B,), jnp.float32))
    sd2 = SIGMA_DATA * SIGMA_DATA
    sig2 = sigmas * sigmas
    c_in = jax.lax.rsqrt(sig2 + sd2)
    c_skip = sd2 / (sig2 + sd2)
    c_out = sigmas * SIGMA_DATA * jax.lax.rsqrt(sig2 + sd2)
    c_noise = jnp.log(jnp.maximum(sigmas, 1e-20)) * 0.25
    # loss_weight exactly as in the module: (sigma^2 + sigma_data^2) * (sigma * sigma_data)^2
    lw = (sig2 + sd2) * jnp.square(sigmas * SIGMA_DATA)
    wloss = lw / float(C * N)                     # also folds the per-batch mean over C*H*W
    coefs = jnp.stack([c_in, c_skip, c_out, sigmas, wloss], axis=1).astype(jnp.float32)

    # learned-sinusoidal cond + time MLP (depends only on sigma -> hoisted out of kernel)
    tt = c_noise[:, None]                                         # (B, 1)
    freqs = tt * params["wf"] * (2.0 * math.pi)                   # (B, NFREQ)
    fourier = jnp.concatenate([tt, jnp.sin(freqs), jnp.cos(freqs)], axis=-1)
    th = _gelu(fourier @ params["wt1"] + params["bt1"])
    temb = th @ params["wt2"] + params["bt2"]                     # (B, HID)
    tembb = (temb + params["bc1"]).reshape(B, HID, 1).astype(jnp.float32)  # fold conv1 bias

    wc1t = jnp.transpose(params["wc1"]).astype(jnp.float32)       # (HID, C), wc1t[k,c]=wc1[c,k]
    wc2 = params["wc2"].astype(jnp.float32)                       # (HID, C)
    bc2c = params["bc2"].reshape(C, 1).astype(jnp.float32)        # (C, 1)

    # lane-dense layout: NCHW -> (B, C, H*W); no transpose needed
    x = images_nchw.reshape(B, C, N).astype(jnp.float32)
    # Gaussian noise generated host-side (in-kernel PRNG is unavailable in interpret
    # mode); streamed per-tile with the same lane-dense BlockSpec as the images.
    noise = jax.random.normal(k_noise, (B, C, N), jnp.float32)

    # TODO(synk): self-conditioning branch (self_condition and random()<0.5) omitted;
    # the synthetic net has self_condition=False, so self_cond is always None.

    TN = _pick_tile(N)
    NT = N // TN
    kernel = make_kernel(C, HID, TN)

    out = pl.pallas_call(
        kernel,
        out_shape=jax.ShapeDtypeStruct((B, 8, 128), jnp.float32),
        grid=(B, NT),
        in_specs=[
            pl.BlockSpec(memory_space=pltpu.MemorySpace.SMEM),    # coefs (B, 5) f32
            pl.BlockSpec((1, C, TN), lambda b, t: (b, 0, t)),     # images (B, C, N)
            pl.BlockSpec((1, C, TN), lambda b, t: (b, 0, t)),     # noise  (B, C, N)
            pl.BlockSpec((1, HID, 1), lambda b, t: (b, 0, 0)),    # temb + bc1 (B, HID, 1)
            pl.BlockSpec((HID, C), lambda b, t: (0, 0)),          # wc1^T (resident)
            pl.BlockSpec((HID, C), lambda b, t: (0, 0)),          # wc2   (resident)
            pl.BlockSpec((C, 1), lambda b, t: (0, 0)),            # bc2   (resident)
        ],
        out_specs=pl.BlockSpec((1, 8, 128), lambda b, t: (b, 0, 0)),
        scratch_shapes=[pltpu.VMEM((1, 1), jnp.float32)],         # per-batch SSE accumulator
        compiler_params=pltpu.CompilerParams(
            dimension_semantics=("parallel", "arbitrary"),
            vmem_limit_bytes=32 * 1024 * 1024,
        ),
    )(coefs, x, noise, tembb, wc1t, wc2, bc2c)

    # per-batch weighted losses -> final mean (matches losses.mean())
    return jnp.mean(out[:, 0, 0])


if __name__ == "__main__":
    key = jax.random.PRNGKey(0)
    k_params, k_img, k_fwd = jax.random.split(key, 3)

    B, C, H, W = 2, 4, 16, 16  # image_size=16, channels=4
    images = jax.random.uniform(k_img, (B, C, H, W), jnp.float32)  # raw images in [0, 1]

    params = init_net_params(k_params, C, HID=32, NFREQ=8)

    loss = elucidated_diffusion_forward(images, k_fwd, params)
    loss = jax.block_until_ready(loss)
    assert loss.shape == () and bool(jnp.isfinite(loss))
    print("KERNEL_OK")
</pallas_src>

<mosaic_0001>
module attributes {stable_mosaic.version = 11 : i64} {
  func.func @kernel(%arg0: i32, %arg1: i32, %arg2: memref<2x5xf32, #tpu.memory_space<smem>>, %arg3: memref<1x4x256xf32, #tpu.memory_space<vmem>>, %arg4: memref<1x4x256xf32, #tpu.memory_space<vmem>>, %arg5: memref<1x32x1xf32, #tpu.memory_space<vmem>>, %arg6: memref<32x4xf32, #tpu.memory_space<vmem>>, %arg7: memref<32x4xf32, #tpu.memory_space<vmem>>, %arg8: memref<4x1xf32, #tpu.memory_space<vmem>>, %arg9: memref<1x8x128xf32, #tpu.memory_space<vmem>>, %arg10: memref<1x1xf32, #tpu.memory_space<vmem>>) attributes {dimension_semantics = [#tpu.dimension_semantics<parallel>, #tpu.dimension_semantics<arbitrary>], iteration_bounds = array<i64: 2, 1>, scalar_prefetch = 0 : i64, scratch_operands = 1 : i64, tpu.core_type = #tpu.core_type<tc>, window_params = [{transform_indices = @transform_0, window_bounds = array<i64: 2, 5>}, {transform_indices = @transform_1, window_bounds = array<i64: 1, 4, 256>}, {transform_indices = @transform_2, window_bounds = array<i64: 1, 4, 256>}, {transform_indices = @transform_3, window_bounds = array<i64: 1, 32, 1>}, {pipeline_mode = #tpu.pipeline_mode<synchronous>, transform_indices = @transform_4, window_bounds = array<i64: 32, 4>}, {pipeline_mode = #tpu.pipeline_mode<synchronous>, transform_indices = @transform_5, window_bounds = array<i64: 32, 4>}, {pipeline_mode = #tpu.pipeline_mode<synchronous>, transform_indices = @transform_6, window_bounds = array<i64: 4, 1>}, {transform_indices = @transform_7, window_bounds = array<i64: 1, 8, 128>}]} {
    %c0_i32 = arith.constant 0 : i32
    %0 = arith.cmpi eq, %arg1, %c0_i32 : i32
    %1 = arith.extui %0 : i1 to i32
    %c0_i32_0 = arith.constant 0 : i32
    %2 = arith.cmpi ne, %1, %c0_i32_0 : i32
    scf.if %2 {
      %cst_44 = arith.constant 0.000000e+00 : f32
      %107 = vector.broadcast %cst_44 : f32 to vector<1x1xf32>
      %c0_45 = arith.constant 0 : index
      %c0_46 = arith.constant 0 : index
      %108 = vector.load %arg10[%c0_45, %c0_46] : memref<1x1xf32, #tpu.memory_space<vmem>>, vector<1x1xf32>
      tpu.vector_store %arg10[%c0_45, %c0_46], %107 {strides = array<i32>} : memref<1x1xf32, #tpu.memory_space<vmem>>, vector<1x1xf32>,
    } else {
    }
    %3 = arith.index_cast %arg0 : i32 to index
    %c0 = arith.constant 0 : index
    %4 = memref.load %arg2[%3, %c0] : memref<2x5xf32, #tpu.memory_space<smem>>
    %5 = arith.index_cast %arg0 : i32 to index
    %c1 = arith.constant 1 : index
    %6 = memref.load %arg2[%5, %c1] : memref<2x5xf32, #tpu.memory_space<smem>>
    %7 = arith.index_cast %arg0 : i32 to index
    %c2 = arith.constant 2 : index
    %8 = memref.load %arg2[%7, %c2] : memref<2x5xf32, #tpu.memory_space<smem>>
    %9 = arith.index_cast %arg0 : i32 to index
    %c3 = arith.constant 3 : index
    %10 = memref.load %arg2[%9, %c3] : memref<2x5xf32, #tpu.memory_space<smem>>
    %c0_1 = arith.constant 0 : index
    %c0_2 = arith.constant 0 : index
    %c0_3 = arith.constant 0 : index
    %11 = vector.load %arg3[%c0_1, %c0_2, %c0_3] : memref<1x4x256xf32, #tpu.memory_space<vmem>>, vector<1x4x256xf32>
    %12 = vector.shape_cast %11 : vector<1x4x256xf32> to vector<4x256xf32>
    %cst = arith.constant 2.000000e+00 : f32
    %13 = vector.broadcast %cst : f32 to vector<4x256xf32>
    %14 = arith.mulf %12, %13 : vector<4x256xf32>
    %cst_4 = arith.constant 1.000000e+00 : f32
    %15 = vector.broadcast %cst_4 : f32 to vector<4x256xf32>
    %16 = arith.subf %14, %15 : vector<4x256xf32>
    %c0_5 = arith.constant 0 : index
    %c0_6 = arith.constant 0 : index
    %c0_7 = arith.constant 0 : index
    %17 = vector.load %arg4[%c0_5, %c0_6, %c0_7] : memref<1x4x256xf32, #tpu.memory_space<vmem>>, vector<1x4x256xf32>
    %18 = vector.shape_cast %17 : vector<1x4x256xf32> to vector<4x256xf32>
    %19 = vector.broadcast %10 : f32 to vector<4x256xf32>
    %20 = arith.mulf %19, %18 : vector<4x256xf32>
    %21 = arith.addf %16, %20 : vector<4x256xf32>
    %22 = vector.broadcast %4 : f32 to vector<4x256xf32>
    %23 = arith.mulf %22, %21 : vector<4x256xf32>
    %c0_8 = arith.constant 0 : index
    %c0_9 = arith.constant 0 : index
    %c0_10 = arith.constant 0 : index
    %24 = vector.load %arg5[%c0_8, %c0_9, %c0_10] : memref<1x32x1xf32, #tpu.memory_space<vmem>>, vector<1x32x1xf32>
    %25 = vector.shape_cast %24 : vector<1x32x1xf32> to vector<32x1xf32>
    %26 = vector.shape_cast %25 : vector<32x1xf32> to vector<32x1xf32>
    %27 = vector.broadcast %26 : vector<32x1xf32> to vector<32x256xf32>
    %c0_11 = arith.constant 0 : index
    %c0_12 = arith.constant 0 : index
    %28 = vector.load %arg6[%c0_11, %c0_12] : memref<32x4xf32, #tpu.memory_space<vmem>>, vector<32x1xf32>
    %29 = vector.extract_strided_slice %23 {offsets = [0, 0], sizes = [1, 256], strides = [1, 1]} : vector<4x256xf32> to vector<1x256xf32>
    %30 = vector.broadcast %28 : vector<32x1xf32> to vector<32x256xf32>
    %31 = vector.broadcast %29 : vector<1x256xf32> to vector<32x256xf32>
    %32 = arith.mulf %30, %31 : vector<32x256xf32>
    %33 = arith.addf %27, %32 : vector<32x256xf32>
    %c0_13 = arith.constant 0 : index
    %c1_14 = arith.constant 1 : index
    %34 = vector.load %arg6[%c0_13, %c1_14] : memref<32x4xf32, #tpu.memory_space<vmem>>, vector<32x1xf32>
    %35 = vector.extract_strided_slice %23 {offsets = [1, 0], sizes = [1, 256], strides = [1, 1]} : vector<4x256xf32> to vector<1x256xf32>
    %36 = vector.broadcast %34 : vector<32x1xf32> to vector<32x256xf32>
    %37 = vector.broadcast %35 : vector<1x256xf32> to vector<32x256xf32>
    %38 = arith.mulf %36, %37 : vector<32x256xf32>
    %39 = arith.addf %33, %38 : vector<32x256xf32>
    %c0_15 = arith.constant 0 : index
    %c2_16 = arith.constant 2 : index
    %40 = vector.load %arg6[%c0_15, %c2_16] : memref<32x4xf32, #tpu.memory_space<vmem>>, vector<32x1xf32>
    %41 = vector.extract_strided_slice %23 {offsets = [2, 0], sizes = [1, 256], strides = [1, 1]} : vector<4x256xf32> to vector<1x256xf32>
    %42 = vector.broadcast %40 : vector<32x1xf32> to vector<32x256xf32>
    %43 = vector.broadcast %41 : vector<1x256xf32> to vector<32x256xf32>
    %44 = arith.mulf %42, %43 : vector<32x256xf32>
    %45 = arith.addf %39, %44 : vector<32x256xf32>
    %c0_17 = arith.constant 0 : index
    %c3_18 = arith.constant 3 : index
    %46 = vector.load %arg6[%c0_17, %c3_18] : memref<32x4xf32, #tpu.memory_space<vmem>>, vector<32x1xf32>
    %47 = vector.extract_strided_slice %23 {offsets = [3, 0], sizes = [1, 256], strides = [1, 1]} : vector<4x256xf32> to vector<1x256xf32>
    %48 = vector.broadcast %46 : vector<32x1xf32> to vector<32x256xf32>
    %49 = vector.broadcast %47 : vector<1x256xf32> to vector<32x256xf32>
    %50 = arith.mulf %48, %49 : vector<32x256xf32>
    %51 = arith.addf %45, %50 : vector<32x256xf32>
    %cst_19 = arith.constant 5.000000e-01 : f32
    %52 = vector.broadcast %cst_19 : f32 to vector<32x256xf32>
    %53 = arith.mulf %52, %51 : vector<32x256xf32>
    %cst_20 = arith.constant 4.471500e-02 : f32
    %54 = vector.broadcast %cst_20 : f32 to vector<32x256xf32>
    %55 = arith.mulf %54, %51 : vector<32x256xf32>
    %56 = arith.mulf %55, %51 : vector<32x256xf32>
    %57 = arith.mulf %56, %51 : vector<32x256xf32>
    %58 = arith.addf %51, %57 : vector<32x256xf32>
    %cst_21 = arith.constant 0.797884583 : f32
    %59 = vector.broadcast %cst_21 : f32 to vector<32x256xf32>
    %60 = arith.mulf %59, %58 : vector<32x256xf32>
    %61 = math.tanh %60 : vector<32x256xf32>
    %cst_22 = arith.constant 1.000000e+00 : f32
    %62 = vector.broadcast %cst_22 : f32 to vector<32x256xf32>
    %63 = arith.addf %62, %61 : vector<32x256xf32>
    %64 = arith.mulf %53, %63 : vector<32x256xf32>
    %c0_23 = arith.constant 0 : index
    %c0_24 = arith.constant 0 : index
    %65 = vector.load %arg7[%c0_23, %c0_24] : memref<32x4xf32, #tpu.memory_space<vmem>>, vector<32x1xf32>
    %66 = vector.broadcast %65 : vector<32x1xf32> to vector<32x256xf32>
    %67 = arith.mulf %66, %64 : vector<32x256xf32>
    %cst_25 = arith.constant dense<0.000000e+00> : vector<256xf32>
    %68 = vector.multi_reduction <add>, %67, %cst_25 [0] : vector<32x256xf32> to vector<256xf32>
    %69 = vector.shape_cast %68 : vector<256xf32> to vector<1x256xf32>
    %c0_26 = arith.constant 0 : index
    %c1_27 = arith.constant 1 : index
    %70 = vector.load %arg7[%c0_26, %c1_27] : memref<32x4xf32, #tpu.memory_space<vmem>>, vector<32x1xf32>
    %71 = vector.broadcast %70 : vector<32x1xf32> to vector<32x256xf32>
    %72 = arith.mulf %71, %64 : vector<32x256xf32>
    %cst_28 = arith.constant dense<0.000000e+00> : vector<256xf32>
    %73 = vector.multi_reduction <add>, %72, %cst_28 [0] : vector<32x256xf32> to vector<256xf32>
    %74 = vector.shape_cast %73 : vector<256xf32> to vector<1x256xf32>
    %c0_29 = arith.constant 0 : index
    %c2_30 = arith.constant 2 : index
    %75 = vector.load %arg7[%c0_29, %c2_30] : memref<32x4xf32, #tpu.memory_space<vmem>>, vector<32x1xf32>
    %76 = vector.broadcast %75 : vector<32x1xf32> to vector<32x256xf32>
    %77 = arith.mulf %76, %64 : vector<32x256xf32>
    %cst_31 = arith.constant dense<0.000000e+00> : vector<256xf32>
    %78 = vector.multi_reduction <add>, %77, %cst_31 [0] : vector<32x256xf32> to vector<256xf32>
    %79 = vector.shape_cast %78 : vector<256xf32> to vector<1x256xf32>
    %c0_32 = arith.constant 0 : index
    %c3_33 = arith.constant 3 : index
    %80 = vector.load %arg7[%c0_32, %c3_33] : memref<32x4xf32, #tpu.memory_space<vmem>>, vector<32x1xf32>
    %81 = vector.broadcast %80 : vector<32x1xf32> to vector<32x256xf32>
    %82 = arith.mulf %81, %64 : vector<32x256xf32>
    %cst_34 = arith.constant dense<0.000000e+00> : vector<256xf32>
    %83 = vector.multi_reduction <add>, %82, %cst_34 [0] : vector<32x256xf32> to vector<256xf32>
    %84 = vector.shape_cast %83 : vector<256xf32> to vector<1x256xf32>
    %85 = tpu.concatenate %69, %74, %79, %84 in 0 : vector<1x256xf32>, vector<1x256xf32>, vector<1x256xf32>, vector<1x256xf32> -> vector<4x256xf32>
    %c0_35 = arith.constant 0 : index
    %c0_36 = arith.constant 0 : index
    %86 = vector.load %arg8[%c0_35, %c0_36] : memref<4x1xf32, #tpu.memory_space<vmem>>, vector<4x1xf32>
    %87 = vector.broadcast %86 : vector<4x1xf32> to vector<4x256xf32>
    %88 = arith.addf %85, %87 : vector<4x256xf32>
    %89 = vector.broadcast %6 : f32 to vector<4x256xf32>
    %90 = arith.mulf %89, %21 : vector<4x256xf32>
    %91 = vector.broadcast %8 : f32 to vector<4x256xf32>
    %92 = arith.mulf %91, %88 : vector<4x256xf32>
    %93 = arith.addf %90, %92 : vector<4x256xf32>
    %94 = arith.subf %93, %16 : vector<4x256xf32>
    %c0_37 = arith.constant 0 : index
    %c0_38 = arith.constant 0 : index
    %95 = vector.load %arg10[%c0_37, %c0_38] : memref<1x1xf32, #tpu.memory_space<vmem>>, vector<1x1xf32>
    %96 = arith.mulf %94, %94 : vector<4x256xf32>
    %97 = vector.shape_cast %96 : vector<4x256xf32> to vector<1x4x256xf32>
    %cst_39 = arith.constant dense<0.000000e+00> : vector<1xf32>
    %98 = vector.multi_reduction <add>, %97, %cst_39 [1, 2] : vector<1x4x256xf32> to vector<1xf32>
    %99 = vector.shape_cast %98 : vector<1xf32> to vector<1x1x1xf32>
    %100 = vector.extract %99[0, 0, 0] : f32 from vector<1x1x1xf32>
    %101 = vector.broadcast %100 : f32 to vector<1x1xf32>
    %102 = arith.addf %95, %101 : vector<1x1xf32>
    %c0_40 = arith.constant 0 : index
    %c0_41 = arith.constant 0 : index
    %103 = vector.load %arg10[%c0_40, %c0_41] : memref<1x1xf32, #tpu.memory_space<vmem>>, vector<1x1xf32>
    tpu.vector_store %arg10[%c0_40, %c0_41], %102 {strides = array<i32>} : memref<1x1xf32, #tpu.memory_space<vmem>>, vector<1x1xf32>,
    %c0_i32_42 = arith.constant 0 : i32
    %104 = arith.cmpi eq, %arg1, %c0_i32_42 : i32
    %105 = arith.extui %104 : i1 to i32
    %c0_i32_43 = arith.constant 0 : i32
    %106 = arith.cmpi ne, %105, %c0_i32_43 : i32
    scf.if %106 {
      %107 = arith.index_cast %arg0 : i32 to index
      %c4 = arith.constant 4 : index
      %108 = memref.load %arg2[%107, %c4] : memref<2x5xf32, #tpu.memory_space<smem>>
      %c0_44 = arith.constant 0 : index
      %c0_45 = arith.constant 0 : index
      %109 = vector.load %arg10[%c0_44, %c0_45] : memref<1x1xf32, #tpu.memory_space<vmem>>, vector<1x1xf32>
      %110 = vector.broadcast %108 : f32 to vector<1x1xf32>
      %111 = arith.mulf %109, %110 : vector<1x1xf32>
      %112 = vector.shape_cast %111 : vector<1x1xf32> to vector<1x1x1xf32>
      %113 = vector.shape_cast %112 : vector<1x1x1xf32> to vector<1x1x1xf32>
      %114 = vector.broadcast %113 : vector<1x1x1xf32> to vector<1x8x128xf32>
      %c0_46 = arith.constant 0 : index
      %c0_47 = arith.constant 0 : index
      %c0_48 = arith.constant 0 : index
      %115 = vector.load %arg9[%c0_46, %c0_47, %c0_48] : memref<1x8x128xf32, #tpu.memory_space<vmem>>, vector<1x8x128xf32>
      tpu.vector_store %arg9[%c0_46, %c0_47, %c0_48], %114 {strides = array<i32>} : memref<1x8x128xf32, #tpu.memory_space<vmem>>, vector<1x8x128xf32>,
    } else {
    }
    return
  }
  func.func @transform_0(%arg0: i32, %arg1: i32) -> (i32, i32) {
    %c0_i32 = arith.constant 0 : i32
    %c0_i32_0 = arith.constant 0 : i32
    %c0_i32_1 = arith.constant 0 : i32
    return %c0_i32, %c0_i32_0 : i32, i32
  }
  func.func @transform_1(%arg0: i32, %arg1: i32) -> (i32, i32, i32) {
    %c0_i32 = arith.constant 0 : i32
    %c0_i32_0 = arith.constant 0 : i32
    return %arg0, %c0_i32, %arg1 : i32, i32, i32
  }
  func.func @transform_2(%arg0: i32, %arg1: i32) -> (i32, i32, i32) {
    %c0_i32 = arith.constant 0 : i32
    %c0_i32_0 = arith.constant 0 : i32
    return %arg0, %c0_i32, %arg1 : i32, i32, i32
  }
  func.func @transform_3(%arg0: i32, %arg1: i32) -> (i32, i32, i32) {
    %c0_i32 = arith.constant 0 : i32
    %c0_i32_0 = arith.constant 0 : i32
    %c0_i32_1 = arith.constant 0 : i32
    return %arg0, %c0_i32, %c0_i32_0 : i32, i32, i32
  }
  func.func @transform_4(%arg0: i32, %arg1: i32) -> (i32, i32) {
    %c0_i32 = arith.constant 0 : i32
    %c0_i32_0 = arith.constant 0 : i32
    %c0_i32_1 = arith.constant 0 : i32
    return %c0_i32, %c0_i32_0 : i32, i32
  }
  func.func @transform_5(%arg0: i32, %arg1: i32) -> (i32, i32) {
    %c0_i32 = arith.constant 0 : i32
    %c0_i32_0 = arith.constant 0 : i32
    %c0_i32_1 = arith.constant 0 : i32
    return %c0_i32, %c0_i32_0 : i32, i32
  }
  func.func @transform_6(%arg0: i32, %arg1: i32) -> (i32, i32) {
    %c0_i32 = arith.constant 0 : i32
    %c0_i32_0 = arith.constant 0 : i32
    %c0_i32_1 = arith.constant 0 : i32
    return %c0_i32, %c0_i32_0 : i32, i32
  }
  func.func @transform_7(%arg0: i32, %arg1: i32) -> (i32, i32, i32) {
    %c0_i32 = arith.constant 0 : i32
    %c0_i32_0 = arith.constant 0 : i32
    %c0_i32_1 = arith.constant 0 : i32
    return %arg0, %c0_i32, %c0_i32_0 : i32, i32, i32
  }
}

</mosaic_0001>

<llo_original>
// kernel: tpu_custom_call.1
$region0: #{tpu_custom_call.1}
  #allocation0 [shape = 'u32[]', space=smem, size = 0x4, offset = 0x4, fixed_abs, tag = 'smem constant byte address 0x4 - core index']
  #allocation1 [shape = 'u32[144,128]{1,0:T(1,128)}', space=vmem, size = 0x12000, scoped, tag = 'internal scratch']
  #allocation2 [shape = 'f32[1,1]{1,0:T(1,128)}', space=vmem, size = 0x200, scoped, tag = 'scratch operand']
  %s0 = inlined_call_operand.vmem [shape: f32[2,5], index: 0, kind: input, shape index: {}]
  %s1 = inlined_call_operand.vmem [shape: f32[2,4,256], index: 1, kind: input, shape index: {}]
  %s2 = inlined_call_operand.vmem [shape: f32[2,4,256], index: 2, kind: input, shape index: {}]
  %s3 = inlined_call_operand.vmem [shape: f32[2,32,1], index: 3, kind: input, shape index: {}]
  %s4 = inlined_call_operand.vmem [shape: f32[32,4], index: 4, kind: input, shape index: {}]
  %s5 = inlined_call_operand.vmem [shape: f32[32,4], index: 5, kind: input, shape index: {}]
  %s6 = inlined_call_operand.vmem [shape: f32[4,1], index: 6, kind: input, shape index: {}]
  %s7 = inlined_call_operand.hbm [shape: f32[2,8,128], index: 7, kind: output, shape index: {}]
  %s8 = sld [smem:[#allocation0]]
  $region73: #{tpu_custom_call.1} parent=0
    _
  %s10 = ssub.s32 1, %s8
  %s11 = scalar_select 0, %s10, %s8
  $region1: #{tpu_custom_call.1} parent=0
    #allocation3 [shape = 'u8[1024]{0}', space=smem, size = 0x400, scoped, tag = 'input window, operand 0, single buffered']
    #allocation4 [shape = 's32[2]{0}', space=sflag, size = 0x8, scoped, tag = 'scoped memory for tpu_custom_call.1']
    #allocation5 [shape = 's32[2]{0}', space=sflag, size = 0x8, scoped, tag = 'scoped memory for tpu_custom_call.1']
    #allocation6 [shape = 'u8[8192]{0}', space=vmem, size = 0x2000, scoped, tag = 'output window, operand 0']
    %12 = vsyncpa [#allocation5], 0
    %13 = vsyncpa [#allocation4], 0
    %s14 = scalar_lea.sflag [#allocation4], 1
    %15 = vsyncpa %s14, 0
    loop: start=0, step=1, limit=4
    $region2: #{tpu_custom_call.1} parent=1 // loop_pre_header
      _
    $region3: #{tpu_custom_call.1} parent=1 // loop_header
      %s17 = sphi 0, %s21
      %p18 = scmp.ge.s32.totalorder %s17, 4
      %s24 = sphi 0, %s36
      %s25 = sphi 0, %s32
      %s26 = sphi 0, %s24
      %s27 = sphi 0, %s25
      %s28 = sphi 0, %s26
      %s29 = sphi 0, %s27
      %s37 = sphi 0, %s37
      %s39 = sphi 0, %s37
      %s40 = sphi 0, %s39
      %s54 = sphi 0, %s40
      %s62 = sphi 0, %s64
      %s65 = sphi 0, %s62
      %s66 = sphi 0, %s65
      %s82 = sphi 0, %s66
      %s90 = sphi 0, %s92
      %s93 = sphi 0, %s90
      %s94 = sphi 0, %s93
      %s110 = sphi 0, %s94
      %s116 = sphi 0, %s118
      %s119 = sphi 0, %s116
      %s120 = sphi 0, %s119
      %s136 = sphi 0, %s120
      %s140 = sphi 0, %s140
      %s142 = sphi 0, %s140
      %s143 = sphi 0, %s142
      %s157 = sphi 0, %s143
      %s161 = sphi 0, %s161
      %s163 = sphi 0, %s161
      %s164 = sphi 0, %s163
      %s178 = sphi 0, %s164
      %s182 = sphi 0, %s182
      %s184 = sphi 0, %s182
      %s185 = sphi 0, %s184
      %s199 = sphi 0, %s185
      %s205 = sphi 0, %s207
      %s208 = sphi 0, %s205
      %s209 = sphi 0, %s208
      %s225 = sphi 0, %s209
    $region4: #{tpu_custom_call.1} parent=1 // loop_header_branch
      %20 = sbr.rel (%p18) target = $region8
    $region5: #{tpu_custom_call.1} parent=1 // loop_body
      %s22 = ssub.s32 %s17, 1
      %s23 = ssub.s32 %s17, 2
      %s30 = sadd.s32 1, %s25
      %p31 = scmp.ge.s32.totalorder %s30, 1
      %s32 = scalar_select %p31, 0, %s30
      %s33 = sadd.s32 1, %s24
      %s34 = scalar_select %p31, %s33, %s24
      %p35 = scmp.ge.s32.totalorder %s34, 2
      %s36 = scalar_select %p35, 0, %s34
      %s38 = sadd.s32 %s37, 1
      %p41 = scmp.eq.s32.totalorder %s17, 1
      %p42 = scmp.ne.s32.totalorder %s37, %s39
      %p43 = scmp.eq.s32.totalorder %s17, 0
      %p44 = por %p42, %p43
      %p45 = scmp.ne.s32.totalorder %s37, %s39
      %p46 = scmp.eq.s32.totalorder %s22, 1
      %p47 = por %p45, %p46
      %p48 = scmp.ne.s32.totalorder %s39, %s40
      %p49 = scmp.eq.s32.totalorder %s22, 0
      %p50 = por %p48, %p49
      %p51 = scmp.ne.s32.totalorder %s39, %s40
      %p52 = scmp.eq.s32.totalorder %s23, 1
      %p53 = por %p51, %p52
      %p55 = scmp.ne.s32.totalorder %s40, %s54
      %p56 = scmp.eq.s32.totalorder %s23, 0
      %p57 = por %p55, %p56
      %s58 = ssub.s32 %s24, %s36
      %s59 = ssub.s32 %s25, %s32
      %s60 = sor.u32 %s58, %s59
      %p61 = scmp.eq.s32.totalorder %s60, 0
      %s63 = sadd.s32 %s62, 1
      %s64 = scalar_select %p61, %s62, %s63
      %p67 = pneg %p61
      %p68 = scmp.eq.s32.totalorder %s17, 1
      %p69 = por %p67, %p68
      %p70 = scmp.ne.s32.totalorder %s62, %s65
      %p71 = scmp.eq.s32.totalorder %s17, 0
      %p72 = por %p70, %p71
      %p73 = scmp.ne.s32.totalorder %s62, %s65
      %p74 = scmp.eq.s32.totalorder %s22, 1
      %p75 = por %p73, %p74
      %p76 = scmp.ne.s32.totalorder %s65, %s66
      %p77 = scmp.eq.s32.totalorder %s22, 0
      %p78 = por %p76, %p77
      %p79 = scmp.ne.s32.totalorder %s65, %s66
      %p80 = scmp.eq.s32.totalorder %s23, 1
      %p81 = por %p79, %p80
      %p83 = scmp.ne.s32.totalorder %s66, %s82
      %p84 = scmp.eq.s32.totalorder %s23, 0
      %p85 = por %p83, %p84
      %s86 = ssub.s32 %s24, %s36
      %s87 = ssub.s32 %s25, %s32
      %s88 = sor.u32 %s86, %s87
      %p89 = scmp.eq.s32.totalorder %s88, 0
      %s91 = sadd.s32 %s90, 1
      %s92 = scalar_select %p89, %s90, %s91
      %p95 = pneg %p89
      %p96 = scmp.eq.s32.totalorder %s17, 1
      %p97 = por %p95, %p96
      %p98 = scmp.ne.s32.totalorder %s90, %s93
      %p99 = scmp.eq.s32.totalorder %s17, 0
      %p100 = por %p98, %p99
      %p101 = scmp.ne.s32.totalorder %s90, %s93
      %p102 = scmp.eq.s32.totalorder %s22, 1
      %p103 = por %p101, %p102
      %p104 = scmp.ne.s32.totalorder %s93, %s94
      %p105 = scmp.eq.s32.totalorder %s22, 0
      %p106 = por %p104, %p105
      %p107 = scmp.ne.s32.totalorder %s93, %s94
      %p108 = scmp.eq.s32.totalorder %s23, 1
      %p109 = por %p107, %p108
      %p111 = scmp.ne.s32.totalorder %s94, %s110
      %p112 = scmp.eq.s32.totalorder %s23, 0
      %p113 = por %p111, %p112
      %s114 = ssub.s32 %s24, %s36
      %p115 = scmp.eq.s32.totalorder %s114, 0
      %s117 = sadd.s32 %s116, 1
      %s118 = scalar_select %p115, %s116, %s117
      %p121 = pneg %p115
      %p122 = scmp.eq.s32.totalorder %s17, 1
      %p123 = por %p121, %p122
      %p124 = scmp.ne.s32.totalorder %s116, %s119
      %p125 = scmp.eq.s32.totalorder %s17, 0
      %p126 = por %p124, %p125
      %p127 = scmp.ne.s32.totalorder %s116, %s119
      %p128 = scmp.eq.s32.totalorder %s22, 1
      %p129 = por %p127, %p128
      %p130 = scmp.ne.s32.totalorder %s119, %s120
      %p131 = scmp.eq.s32.totalorder %s22, 0
      %p132 = por %p130, %p131
      %p133 = scmp.ne.s32.totalorder %s119, %s120
      %p134 = scmp.eq.s32.totalorder %s23, 1
      %p135 = por %p133, %p134
      %p137 = scmp.ne.s32.totalorder %s120, %s136
      %p138 = scmp.eq.s32.totalorder %s23, 0
      %p139 = por %p137, %p138
      %s141 = sadd.s32 %s140, 1
      %p144 = scmp.eq.s32.totalorder %s17, 1
      %p145 = scmp.ne.s32.totalorder %s140, %s142
      %p146 = scmp.eq.s32.totalorder %s17, 0
      %p147 = por %p145, %p146
      %p148 = scmp.ne.s32.totalorder %s140, %s142
      %p149 = scmp.eq.s32.totalorder %s22, 1
      %p150 = por %p148, %p149
      %p151 = scmp.ne.s32.totalorder %s142, %s143
      %p152 = scmp.eq.s32.totalorder %s22, 0
      %p153 = por %p151, %p152
      %p154 = scmp.ne.s32.totalorder %s142, %s143
      %p155 = scmp.eq.s32.totalorder %s23, 1
      %p156 = por %p154, %p155
      %p158 = scmp.ne.s32.totalorder %s143, %s157
      %p159 = scmp.eq.s32.totalorder %s23, 0
      %p160 = por %p158, %p159
      %s162 = sadd.s32 %s161, 1
      %p165 = scmp.eq.s32.totalorder %s17, 1
      %p166 = scmp.ne.s32.totalorder %s161, %s163
      %p167 = scmp.eq.s32.totalorder %s17, 0
      %p168 = por %p166, %p167
      %p169 = scmp.ne.s32.totalorder %s161, %s163
      %p170 = scmp.eq.s32.totalorder %s22, 1
      %p171 = por %p169, %p170
      %p172 = scmp.ne.s32.totalorder %s163, %s164
      %p173 = scmp.eq.s32.totalorder %s22, 0
      %p174 = por %p172, %p173
      %p175 = scmp.ne.s32.totalorder %s163, %s164
      %p176 = scmp.eq.s32.totalorder %s23, 1
      %p177 = por %p175, %p176
      %p179 = scmp.ne.s32.totalorder %s164, %s178
      %p180 = scmp.eq.s32.totalorder %s23, 0
      %p181 = por %p179, %p180
      %s183 = sadd.s32 %s182, 1
      %p186 = scmp.eq.s32.totalorder %s17, 1
      %p187 = scmp.ne.s32.totalorder %s182, %s184
      %p188 = scmp.eq.s32.totalorder %s17, 0
      %p189 = por %p187, %p188
      %p190 = scmp.ne.s32.totalorder %s182, %s184
      %p191 = scmp.eq.s32.totalorder %s22, 1
      %p192 = por %p190, %p191
      %p193 = scmp.ne.s32.totalorder %s184, %s185
      %p194 = scmp.eq.s32.totalorder %s22, 0
      %p195 = por %p193, %p194
      %p196 = scmp.ne.s32.totalorder %s184, %s185
      %p197 = scmp.eq.s32.totalorder %s23, 1
      %p198 = por %p196, %p197
      %p200 = scmp.ne.s32.totalorder %s185, %s199
      %p201 = scmp.eq.s32.totalorder %s23, 0
      %p202 = por %p200, %p201
      %s203 = ssub.s32 %s24, %s36
      %p204 = scmp.eq.s32.totalorder %s203, 0
      %s206 = sadd.s32 %s205, 1
      %s207 = scalar_select %p204, %s205, %s206
      %p210 = pneg %p204
      %p211 = scmp.eq.s32.totalorder %s17, 1
      %p212 = por %p210, %p211
      %p213 = scmp.ne.s32.totalorder %s205, %s208
      %p214 = scmp.eq.s32.totalorder %s17, 0
      %p215 = por %p213, %p214
      %p216 = scmp.ne.s32.totalorder %s205, %s208
      %p217 = scmp.eq.s32.totalorder %s22, 1
      %p218 = por %p216, %p217
      %p219 = scmp.ne.s32.totalorder %s208, %s209
      %p220 = scmp.eq.s32.totalorder %s22, 0
      %p221 = por %p219, %p220
      %p222 = scmp.ne.s32.totalorder %s208, %s209
      %p223 = scmp.eq.s32.totalorder %s23, 1
      %p224 = por %p222, %p223
      %p226 = scmp.ne.s32.totalorder %s209, %s225
      %p227 = scmp.eq.s32.totalorder %s23, 0
      %p228 = por %p226, %p227
      %p229 = scmp.le.s32.totalorder 1, %s17
      %p230 = scmp.lt.s32.totalorder %s17, 3
      %p231 = pnand %p229, %p230
      %p232 = pneg %p231
      // Predicated region
      $region9: #{tpu_custom_call.1} parent=5 // pred_check
        _
      $region10: #{tpu_custom_call.1} parent=5 // pred_check_branch
        %234 = sbr.rel (%p231) target = $region12
      $region11: #{tpu_custom_call.1} parent=5 // pred_region
        %s235 = ssub.s32 %s17, 1
        // Predicated region
        $region13: #{tpu_custom_call.1} parent=11 // pred_check
          %p236 = pneg %p50
        $region14: #{tpu_custom_call.1} parent=11 // pred_check_branch
          %238 = sbr.rel (%p236) target = $region16
        $region15: #{tpu_custom_call.1} parent=11 // pred_region
          %s240 = ssub.s32 32, 32
          %241 = vsyncadd [#allocation5], %s240
          %s243 = sshll.u32 %s0, 4
          %s244 = int_to_ptr.vmem [resolvable:$true] %s243
          %246 = dma.vmem_to_smem %s244, 32, [#allocation3], [#allocation5]
        $region16: #{tpu_custom_call.1} parent=11 // pred_fallthru
          _
        // Predicated region
        $region17: #{tpu_custom_call.1} parent=11 // pred_check
          %p247 = pneg %p153
        $region18: #{tpu_custom_call.1} parent=11 // pred_check_branch
          %249 = sbr.rel (%p247) target = $region20
        $region19: #{tpu_custom_call.1} parent=11 // pred_region
          _
        $region20: #{tpu_custom_call.1} parent=11 // pred_fallthru
          _
        // Predicated region
        $region21: #{tpu_custom_call.1} parent=11 // pred_check
          %p250 = pneg %p174
        $region22: #{tpu_custom_call.1} parent=11 // pred_check_branch
          %252 = sbr.rel (%p250) target = $region24
        $region23: #{tpu_custom_call.1} parent=11 // pred_region
          _
        $region24: #{tpu_custom_call.1} parent=11 // pred_fallthru
          _
        // Predicated region
        $region25: #{tpu_custom_call.1} parent=11 // pred_check
          %p253 = pneg %p195
        $region26: #{tpu_custom_call.1} parent=11 // pred_check_branch
          %255 = sbr.rel (%p253) target = $region28
        $region27: #{tpu_custom_call.1} parent=11 // pred_region
          _
        $region28: #{tpu_custom_call.1} parent=11 // pred_fallthru
          _
      $region12: #{tpu_custom_call.1} parent=5 // pred_fallthru
        _
      %p256 = scmp.lt.s32.totalorder %s17, 2
      // Predicated region
      $region29: #{tpu_custom_call.1} parent=5 // pred_check
        %p257 = pneg %p256
      $region30: #{tpu_custom_call.1} parent=5 // pred_check_branch
        %259 = sbr.rel (%p257) target = $region32
      $region31: #{tpu_custom_call.1} parent=5 // pred_region
        // Predicated region
        $region33: #{tpu_custom_call.1} parent=31 // pred_check
          %p260 = pneg %p72
        $region34: #{tpu_custom_call.1} parent=31 // pred_check_branch
          %262 = sbr.rel (%p260) target = $region36
        $region35: #{tpu_custom_call.1} parent=31 // pred_region
          %s263 = smul.u32 2, %s25
          %p264 = scmp.lt.s32.totalorder %s24, 1
          %s265 = scalar_select %p264, %s24, 1
          %p266 = scmp.lt.s32.totalorder %s263, 1
          %s267 = scalar_select %p266, %s263, 1
          %s268 = smul.addr %s265, 2
          %s269 = sadd.s32 %s267, %s268
          %s270 = smul.addr %s269, 4
          %s271 = scalar_lea.vmem %s1, %s270
          %s272 = smul.u32 2, %s25
        $region36: #{tpu_custom_call.1} parent=31 // pred_fallthru
          _
        // Predicated region
        $region37: #{tpu_custom_call.1} parent=31 // pred_check
          %p273 = pneg %p100
        $region38: #{tpu_custom_call.1} parent=31 // pred_check_branch
          %275 = sbr.rel (%p273) target = $region40
        $region39: #{tpu_custom_call.1} parent=31 // pred_region
          %s276 = smul.u32 2, %s25
          %p277 = scmp.lt.s32.totalorder %s24, 1
          %s278 = scalar_select %p277, %s24, 1
          %p279 = scmp.lt.s32.totalorder %s276, 1
          %s280 = scalar_select %p279, %s276, 1
          %s281 = smul.addr %s278, 2
          %s282 = sadd.s32 %s280, %s281
          %s283 = smul.addr %s282, 4
          %s284 = scalar_lea.vmem %s2, %s283
          %s285 = smul.u32 2, %s25
        $region40: #{tpu_custom_call.1} parent=31 // pred_fallthru
          _
        // Predicated region
        $region41: #{tpu_custom_call.1} parent=31 // pred_check
          %p286 = pneg %p126
        $region42: #{tpu_custom_call.1} parent=31 // pred_check_branch
          %288 = sbr.rel (%p286) target = $region44
        $region43: #{tpu_custom_call.1} parent=31 // pred_region
          %p289 = scmp.lt.s32.totalorder %s24, 1
          %s290 = scalar_select %p289, %s24, 1
          %s291 = smul.addr %s290, 4
          %s292 = smul.addr %s291, 8
          %s293 = scalar_lea.vmem %s3, %s292
        $region44: #{tpu_custom_call.1} parent=31 // pred_fallthru
          _
      $region32: #{tpu_custom_call.1} parent=5 // pred_fallthru
        _
      %p294 = scmp.le.s32.totalorder 1, %s17
      %p295 = scmp.lt.s32.totalorder %s17, 3
      %p296 = pnand %p294, %p295
      %p297 = pneg %p296
      // Predicated region
      $region45: #{tpu_custom_call.1} parent=5 // pred_check
        _
      $region46: #{tpu_custom_call.1} parent=5 // pred_check_branch
        %299 = sbr.rel (%p296) target = $region48
      $region47: #{tpu_custom_call.1} parent=5 // pred_region
        %s300 = ssub.s32 %s17, 1
        // Predicated region
        $region49: #{tpu_custom_call.1} parent=47 // pred_check
          %p301 = pneg %p50
        $region50: #{tpu_custom_call.1} parent=47 // pred_check_branch
          %303 = sbr.rel (%p301) target = $region52
        $region51: #{tpu_custom_call.1} parent=47 // pred_region
          %304 = dma.done [#allocation5], 32
        $region52: #{tpu_custom_call.1} parent=47 // pred_fallthru
          _
        %305 = sfence
        %p306 = pneg %p50
        %p307 = pneg %p47
        %s308 = smul.u32 2, %s27
        %p309 = scmp.lt.s32.totalorder %s26, 1
        %s310 = scalar_select %p309, %s26, 1
        %p311 = scmp.lt.s32.totalorder %s308, 1
        %s312 = scalar_select %p311, %s308, 1
        %s313 = smul.addr %s310, 2
        %s314 = sadd.s32 %s312, %s313
        %s315 = smul.addr %s314, 4
        %s316 = scalar_lea.vmem %s1, %s315
        %p317 = pneg %p78
        %p318 = pneg %p75
        %s319 = smul.u32 2, %s27
        %p320 = scmp.lt.s32.totalorder %s26, 1
        %s321 = scalar_select %p320, %s26, 1
        %p322 = scmp.lt.s32.totalorder %s319, 1
        %s323 = scalar_select %p322, %s319, 1
        %s324 = smul.addr %s321, 2
        %s325 = sadd.s32 %s323, %s324
        %s326 = smul.addr %s325, 4
        %s327 = scalar_lea.vmem %s2, %s326
        %p328 = pneg %p106
        %p329 = pneg %p103
        %p330 = scmp.lt.s32.totalorder %s26, 1
        %s331 = scalar_select %p330, %s26, 1
        %s332 = smul.addr %s331, 4
        %s333 = smul.addr %s332, 8
        %s334 = scalar_lea.vmem %s3, %s333
        %p335 = pneg %p132
        %p336 = pneg %p129
        %p337 = pneg %p153
        %p338 = pneg %p150
        %p339 = pneg %p174
        %p340 = pneg %p171
        %p341 = pneg %p195
        %p342 = pneg %p192
        %p343 = pneg %p221
        %p344 = pneg %p218
        %s345 = sand.u32 %s208, 1
        %s346 = scalar_lea.sflag [#allocation4], %s345
        %s347 = sand.u32 %s208, 1
        %s348 = smul.addr %s347, 8
        %s349 = scalar_lea.vmem [#allocation6], %s348
        %s350 = smul.u32 2, %s27
        %p351 = scmp.lt.s32.totalorder %s26, 1
        %s352 = scalar_select %p351, %s26, 1
        %p353 = scmp.lt.s32.totalorder %s350, 1
        %s354 = scalar_select %p353, %s350, 1
        %s355 = smul.addr %s352, 2
        %s356 = sadd.s32 %s354, %s355
        %s357 = smul.addr %s356, 4
        %s358 = scalar_lea.vmem %s1, %s357
        %s359 = smul.u32 2, %s27
        %s360 = smul.u32 2, %s27
        %p361 = scmp.lt.s32.totalorder %s26, 1
        %s362 = scalar_select %p361, %s26, 1
        %p363 = scmp.lt.s32.totalorder %s360, 1
        %s364 = scalar_select %p363, %s360, 1
        %s365 = smul.addr %s362, 2
        %s366 = sadd.s32 %s364, %s365
        %s367 = smul.addr %s366, 4
        %s368 = scalar_lea.vmem %s2, %s367
        %s369 = smul.u32 2, %s27
        %p370 = scmp.lt.s32.totalorder %s26, 1
        %s371 = scalar_select %p370, %s26, 1
        %s372 = smul.addr %s371, 4
        %s373 = smul.addr %s372, 8
        %s374 = scalar_lea.vmem %s3, %s373
        %p375 = scmp.eq.s32.totalorder %s27, 0
        // Predicated region
        $region53: #{tpu_custom_call.1} parent=47 // pred_check
          %p376 = pneg %p375
        $region54: #{tpu_custom_call.1} parent=47 // pred_check_branch
          %378 = sbr.rel (%p376) target = $region56
        $region55: #{tpu_custom_call.1} parent=47 // pred_region
          %vm379 = vcmask 0
          %380 = vst.msk [vmem:[#allocation2] sm:$0x1] %vm379, 0.0
        $region56: #{tpu_custom_call.1} parent=47 // pred_fallthru
          _
        %s381 = smul.u32 %s26, 128
        %s382 = sld [smem:[#allocation3 + %s381]]
        %s383 = sadd.s32 %s381, 1
        %s384 = sld [smem:[#allocation3 + %s383]]
        %s385 = sadd.s32 %s381, 2
        %s386 = sld [smem:[#allocation3 + %s385]]
        %s387 = sadd.s32 %s381, 3
        %s388 = sld [smem:[#allocation3 + %s387]]
        %v389 = vld [vmem:[%s358] sm:$0xff]
        %v390 = vmul.f32 %v389, 2.0
        %v391 = vsub.f32 %v390, 1.0
        %v392 = vld [vmem:[%s368] sm:$0xff]
        %v393 = vstv %s388
        %v394 = vmul.f32 %v393, %v392
        %v395 = vadd.f32 %v391, %v394
        %v396 = vstv %s382
        %v397 = vmul.f32 %v396, %v395
        %v398 = vld [vmem:[%s374] sm:$0xff]
        %v399 = vld [vmem:[%s374 + $0x8] sm:$0xff]
        %v400 = vld [vmem:[%s374 + $0x10] sm:$0xff]
        %v401 = vld [vmem:[%s374 + $0x18] sm:$0xff]
        %403 = vset.pattern.permute.xlu0 0
        %404 = vperm.xlu0 %403, %v398
        %v405 = vpop.permute.xlu0 %404
        %408 = vset.pattern.permute.xlu0 0
        %409 = vperm.xlu0 %408, %v399
        %v410 = vpop.permute.xlu0 %409
        %413 = vset.pattern.permute.xlu0 0
        %414 = vperm.xlu0 %413, %v400
        %v415 = vpop.permute.xlu0 %414
        %418 = vset.pattern.permute.xlu0 0
        %419 = vperm.xlu0 %418, %v401
        %v420 = vpop.permute.xlu0 %419
        %v422 = vld [vmem:[%s4] sm:$0xff]
        %v423 = vld [vmem:[%s4 + $0x8] sm:$0xff]
        %v424 = vld [vmem:[%s4 + $0x10] sm:$0xff]
        %v425 = vld [vmem:[%s4 + $0x18] sm:$0xff]
        %427 = vset.pattern.permute.xlu0 0
        %428 = vperm.xlu0 %427, %v422
        %v429 = vpop.permute.xlu0 %428
        %432 = vset.pattern.permute.xlu0 0
        %433 = vperm.xlu0 %432, %v423
        %v434 = vpop.permute.xlu0 %433
        %437 = vset.pattern.permute.xlu0 0
        %438 = vperm.xlu0 %437, %v424
        %v439 = vpop.permute.xlu0 %438
        %442 = vset.pattern.permute.xlu0 0
        %443 = vperm.xlu0 %442, %v425
        %v444 = vpop.permute.xlu0 %443
        %v447 = vlaneseq
        %v448 = vshrl.u32 %v447, 7
        %v449 = vsub.s32 0, %v448
        %v450 = vrot.slane %v397, %v449
        %v451 = vlaneseq
        %v452 = vshrl.u32 %v451, 7
        %v453 = vsub.s32 4, %v452
        %v454 = vrot.slane %v397, %v453
        %v457 = vlaneseq
        %v458 = vshrl.u32 %v457, 7
        %v459 = vsub.s32 0, %v458
        %v460 = vrot.slane %v450, %v459
        %v461 = vlaneseq
        %v462 = vshrl.u32 %v461, 7
        %v463 = vsub.s32 0, %v462
        %v464 = vrot.slane %v454, %v463
        %v465 = vmul.f32 %v429, %v460
        %v466 = vmul.f32 %v429, %v464
        %v467 = vmul.f32 %v434, %v460
        %v468 = vmul.f32 %v434, %v464
        %v469 = vmul.f32 %v439, %v460
        %v470 = vmul.f32 %v439, %v464
        %v471 = vmul.f32 %v444, %v460
        %v472 = vmul.f32 %v444, %v464
        %v473 = vadd.f32 %v405, %v465
        %v474 = vadd.f32 %v405, %v466
        %v475 = vadd.f32 %v410, %v467
        %v476 = vadd.f32 %v410, %v468
        %v477 = vadd.f32 %v415, %v469
        %v478 = vadd.f32 %v415, %v470
        %v479 = vadd.f32 %v420, %v471
        %v480 = vadd.f32 %v420, %v472
        %481 = vset.pattern.permute.xlu0 1
        %482 = vperm.xlu0 %481, %v422
        %v483 = vpop.permute.xlu0 %482
        %485 = vset.pattern.permute.xlu0 1
        %486 = vperm.xlu0 %485, %v423
        %v487 = vpop.permute.xlu0 %486
        %489 = vset.pattern.permute.xlu0 1
        %490 = vperm.xlu0 %489, %v424
        %v491 = vpop.permute.xlu0 %490
        %493 = vset.pattern.permute.xlu0 1
        %494 = vperm.xlu0 %493, %v425
        %v495 = vpop.permute.xlu0 %494
        %v497 = vlaneseq
        %v498 = vshrl.u32 %v497, 7
        %v499 = vsub.s32 1, %v498
        %v500 = vrot.slane %v397, %v499
        %v501 = vlaneseq
        %v502 = vshrl.u32 %v501, 7
        %v503 = vsub.s32 5, %v502
        %v504 = vrot.slane %v397, %v503
        %v507 = vlaneseq
        %v508 = vshrl.u32 %v507, 7
        %v509 = vsub.s32 1, %v508
        %v510 = vrot.slane %v500, %v509
        %v511 = vlaneseq
        %v512 = vshrl.u32 %v511, 7
        %v513 = vsub.s32 1, %v512
        %v514 = vrot.slane %v504, %v513
        %v515 = vmul.f32 %v483, %v510
        %v516 = vmul.f32 %v483, %v514
        %v517 = vmul.f32 %v487, %v510
        %v518 = vmul.f32 %v487, %v514
        %v519 = vmul.f32 %v491, %v510
        %v520 = vmul.f32 %v491, %v514
        %v521 = vmul.f32 %v495, %v510
        %v522 = vmul.f32 %v495, %v514
        %v523 = vadd.f32 %v473, %v515
        %v524 = vadd.f32 %v474, %v516
        %v525 = vadd.f32 %v475, %v517
        %v526 = vadd.f32 %v476, %v518
        %v527 = vadd.f32 %v477, %v519
        %v528 = vadd.f32 %v478, %v520
        %v529 = vadd.f32 %v479, %v521
        %v530 = vadd.f32 %v480, %v522
        %531 = vset.pattern.permute.xlu0 2
        %532 = vperm.xlu0 %531, %v422
        %v533 = vpop.permute.xlu0 %532
        %535 = vset.pattern.permute.xlu0 2
        %536 = vperm.xlu0 %535, %v423
        %v537 = vpop.permute.xlu0 %536
        %539 = vset.pattern.permute.xlu0 2
        %540 = vperm.xlu0 %539, %v424
        %v541 = vpop.permute.xlu0 %540
        %543 = vset.pattern.permute.xlu0 2
        %544 = vperm.xlu0 %543, %v425
        %v545 = vpop.permute.xlu0 %544
        %v547 = vlaneseq
        %v548 = vshrl.u32 %v547, 7
        %v549 = vsub.s32 2, %v548
        %v550 = vrot.slane %v397, %v549
        %v551 = vlaneseq
        %v552 = vshrl.u32 %v551, 7
        %v553 = vsub.s32 6, %v552
        %v554 = vrot.slane %v397, %v553
        %v557 = vlaneseq
        %v558 = vshrl.u32 %v557, 7
        %v559 = vsub.s32 2, %v558
        %v560 = vrot.slane %v550, %v559
        %v561 = vlaneseq
        %v562 = vshrl.u32 %v561, 7
        %v563 = vsub.s32 2, %v562
        %v564 = vrot.slane %v554, %v563
        %v565 = vmul.f32 %v533, %v560
        %v566 = vmul.f32 %v533, %v564
        %v567 = vmul.f32 %v537, %v560
        %v568 = vmul.f32 %v537, %v564
        %v569 = vmul.f32 %v541, %v560
        %v570 = vmul.f32 %v541, %v564
        %v571 = vmul.f32 %v545, %v560
        %v572 = vmul.f32 %v545, %v564
        %v573 = vadd.f32 %v523, %v565
        %v574 = vadd.f32 %v524, %v566
        %v575 = vadd.f32 %v525, %v567
        %v576 = vadd.f32 %v526, %v568
        %v577 = vadd.f32 %v527, %v569
        %v578 = vadd.f32 %v528, %v570
        %v579 = vadd.f32 %v529, %v571
        %v580 = vadd.f32 %v530, %v572
        %581 = vset.pattern.permute.xlu0 3
        %582 = vperm.xlu0 %581, %v422
        %v583 = vpop.permute.xlu0 %582
        %585 = vset.pattern.permute.xlu0 3
        %586 = vperm.xlu0 %585, %v423
        %v587 = vpop.permute.xlu0 %586
        %589 = vset.pattern.permute.xlu0 3
        %590 = vperm.xlu0 %589, %v424
        %v591 = vpop.permute.xlu0 %590
        %593 = vset.pattern.permute.xlu0 3
        %594 = vperm.xlu0 %593, %v425
        %v595 = vpop.permute.xlu0 %594
        %v597 = vlaneseq
        %v598 = vshrl.u32 %v597, 7
        %v599 = vsub.s32 3, %v598
        %v600 = vrot.slane %v397, %v599
        %v601 = vlaneseq
        %v602 = vshrl.u32 %v601, 7
        %v603 = vsub.s32 7, %v602
        %v604 = vrot.slane %v397, %v603
        %v607 = vlaneseq
        %v608 = vshrl.u32 %v607, 7
        %v609 = vsub.s32 3, %v608
        %v610 = vrot.slane %v600, %v609
        %v611 = vlaneseq
        %v612 = vshrl.u32 %v611, 7
        %v613 = vsub.s32 3, %v612
        %v614 = vrot.slane %v604, %v613
        %v615 = vmul.f32 %v583, %v610
        %v616 = vmul.f32 %v583, %v614
        %v617 = vmul.f32 %v587, %v610
        %v618 = vmul.f32 %v587, %v614
        %v619 = vmul.f32 %v591, %v610
        %v620 = vmul.f32 %v591, %v614
        %v621 = vmul.f32 %v595, %v610
        %v622 = vmul.f32 %v595, %v614
        %v623 = vadd.f32 %v573, %v615
        %v624 = vadd.f32 %v574, %v616
        %v625 = vadd.f32 %v575, %v617
        %v626 = vadd.f32 %v576, %v618
        %v627 = vadd.f32 %v577, %v619
        %v628 = vadd.f32 %v578, %v620
        %v629 = vadd.f32 %v579, %v621
        %v630 = vadd.f32 %v580, %v622
        %v631 = vmul.f32 %v623, 0.5
        %v632 = vmul.f32 %v624, 0.5
        %v633 = vmul.f32 %v625, 0.5
        %v634 = vmul.f32 %v626, 0.5
        %v635 = vmul.f32 %v627, 0.5
        %v636 = vmul.f32 %v628, 0.5
        %v637 = vmul.f32 %v629, 0.5
        %v638 = vmul.f32 %v630, 0.5
        %v639 = vmul.f32 %v623, 0.044715
        %v640 = vmul.f32 %v624, 0.044715
        %v641 = vmul.f32 %v625, 0.044715
        %v642 = vmul.f32 %v626, 0.044715
        %v643 = vmul.f32 %v627, 0.044715
        %v644 = vmul.f32 %v628, 0.044715
        %v645 = vmul.f32 %v629, 0.044715
        %v646 = vmul.f32 %v630, 0.044715
        %v647 = vmul.f32 %v639, %v623
        %v648 = vmul.f32 %v640, %v624
        %v649 = vmul.f32 %v641, %v625
        %v650 = vmul.f32 %v642, %v626
        %v651 = vmul.f32 %v643, %v627
        %v652 = vmul.f32 %v644, %v628
        %v653 = vmul.f32 %v645, %v629
        %v654 = vmul.f32 %v646, %v630
        %v655 = vmul.f32 %v647, %v623
        %v656 = vmul.f32 %v648, %v624
        %v657 = vmul.f32 %v649, %v625
        %v658 = vmul.f32 %v650, %v626
        %v659 = vmul.f32 %v651, %v627
        %v660 = vmul.f32 %v652, %v628
        %v661 = vmul.f32 %v653, %v629
        %v662 = vmul.f32 %v654, %v630
        %v663 = vadd.f32 %v623, %v655
        %v664 = vadd.f32 %v624, %v656
        %v665 = vadd.f32 %v625, %v657
        %v666 = vadd.f32 %v626, %v658
        %v667 = vadd.f32 %v627, %v659
        %v668 = vadd.f32 %v628, %v660
        %v669 = vadd.f32 %v629, %v661
        %v670 = vadd.f32 %v630, %v662
        %v671 = vmul.f32 %v663, 0.7978846
        %v672 = vmul.f32 %v664, 0.7978846
        %v673 = vmul.f32 %v665, 0.7978846
        %v674 = vmul.f32 %v666, 0.7978846
        %v675 = vmul.f32 %v667, 0.7978846
        %v676 = vmul.f32 %v668, 0.7978846
        %v677 = vmul.f32 %v669, 0.7978846
        %v678 = vmul.f32 %v670, 0.7978846
        %v679 = vtanh.pop %v671
        %v680 = vtanh.pop %v672
        %v681 = vtanh.pop %v673
        %v682 = vtanh.pop %v674
        %v683 = vtanh.pop %v675
        %v684 = vtanh.pop %v676
        %v685 = vtanh.pop %v677
        %v686 = vtanh.pop %v678
        %v687 = vadd.f32 %v679, 1.0
        %v688 = vadd.f32 %v680, 1.0
        %v689 = vadd.f32 %v681, 1.0
        %v690 = vadd.f32 %v682, 1.0
        %v691 = vadd.f32 %v683, 1.0
        %v692 = vadd.f32 %v684, 1.0
        %v693 = vadd.f32 %v685, 1.0
        %v694 = vadd.f32 %v686, 1.0
        %v695 = vmul.f32 %v631, %v687
        %v696 = vmul.f32 %v632, %v688
        %v697 = vmul.f32 %v633, %v689
        %v698 = vmul.f32 %v634, %v690
        %v699 = vmul.f32 %v635, %v691
        %v700 = vmul.f32 %v636, %v692
        %v701 = vmul.f32 %v637, %v693
        %v702 = vmul.f32 %v638, %v694
        %v703 = vld [vmem:[%s5] sm:$0xff]
        %v704 = vld [vmem:[%s5 + $0x8] sm:$0xff]
        %v705 = vld [vmem:[%s5 + $0x10] sm:$0xff]
        %v706 = vld [vmem:[%s5 + $0x18] sm:$0xff]
        %708 = vset.pattern.permute.xlu0 0
        %709 = vperm.xlu0 %708, %v703
        %v710 = vpop.permute.xlu0 %709
        %713 = vset.pattern.permute.xlu0 0
        %714 = vperm.xlu0 %713, %v704
        %v715 = vpop.permute.xlu0 %714
        %718 = vset.pattern.permute.xlu0 0
        %719 = vperm.xlu0 %718, %v705
        %v720 = vpop.permute.xlu0 %719
        %723 = vset.pattern.permute.xlu0 0
        %724 = vperm.xlu0 %723, %v706
        %v725 = vpop.permute.xlu0 %724
        %v727 = vmul.f32 %v710, %v695
        %v728 = vmul.f32 %v710, %v696
        %v729 = vmul.f32 %v715, %v697
        %v730 = vmul.f32 %v715, %v698
        %v731 = vmul.f32 %v720, %v699
        %v732 = vmul.f32 %v720, %v700
        %v733 = vmul.f32 %v725, %v701
        %v734 = vmul.f32 %v725, %v702
        %v735 = vadd.f32 %v727, %v729
        %v736 = vadd.f32 %v735, %v731
        %v737 = vadd.f32 %v736, %v733
        %v738 = vrot.slane %v737, 4
        %v739 = vadd.f32 %v737, %v738
        %v740 = vrot.slane %v739, 2
        %v741 = vadd.f32 %v739, %v740
        %v742 = vrot.slane %v741, 1
        %v743 = vadd.f32 %v741, %v742
        %v744 = vadd.f32 %v728, %v730
        %v745 = vadd.f32 %v744, %v732
        %v746 = vadd.f32 %v745, %v734
        %v747 = vrot.slane %v746, 4
        %v748 = vadd.f32 %v746, %v747
        %v749 = vrot.slane %v748, 2
        %v750 = vadd.f32 %v748, %v749
        %v751 = vrot.slane %v750, 1
        %v752 = vadd.f32 %v750, %v751
        %753 = vset.pattern.permute.xlu0 1
        %754 = vperm.xlu0 %753, %v703
        %v755 = vpop.permute.xlu0 %754
        %757 = vset.pattern.permute.xlu0 1
        %758 = vperm.xlu0 %757, %v704
        %v759 = vpop.permute.xlu0 %758
        %761 = vset.pattern.permute.xlu0 1
        %762 = vperm.xlu0 %761, %v705
        %v763 = vpop.permute.xlu0 %762
        %765 = vset.pattern.permute.xlu0 1
        %766 = vperm.xlu0 %765, %v706
        %v767 = vpop.permute.xlu0 %766
        %v769 = vmul.f32 %v755, %v695
        %v770 = vmul.f32 %v755, %v696
        %v771 = vmul.f32 %v759, %v697
        %v772 = vmul.f32 %v759, %v698
        %v773 = vmul.f32 %v763, %v699
        %v774 = vmul.f32 %v763, %v700
        %v775 = vmul.f32 %v767, %v701
        %v776 = vmul.f32 %v767, %v702
        %v777 = vadd.f32 %v769, %v771
        %v778 = vadd.f32 %v777, %v773
        %v779 = vadd.f32 %v778, %v775
        %v780 = vrot.slane %v779, 4
        %v781 = vadd.f32 %v779, %v780
        %v782 = vrot.slane %v781, 2
        %v783 = vadd.f32 %v781, %v782
        %v784 = vrot.slane %v783, 1
        %v785 = vadd.f32 %v783, %v784
        %v786 = vadd.f32 %v770, %v772
        %v787 = vadd.f32 %v786, %v774
        %v788 = vadd.f32 %v787, %v776
        %v789 = vrot.slane %v788, 4
        %v790 = vadd.f32 %v788, %v789
        %v791 = vrot.slane %v790, 2
        %v792 = vadd.f32 %v790, %v791
        %v793 = vrot.slane %v792, 1
        %v794 = vadd.f32 %v792, %v793
        %795 = vset.pattern.permute.xlu0 2
        %796 = vperm.xlu0 %795, %v703
        %v797 = vpop.permute.xlu0 %796
        %799 = vset.pattern.permute.xlu0 2
        %800 = vperm.xlu0 %799, %v704
        %v801 = vpop.permute.xlu0 %800
        %803 = vset.pattern.permute.xlu0 2
        %804 = vperm.xlu0 %803, %v705
        %v805 = vpop.permute.xlu0 %804
        %807 = vset.pattern.permute.xlu0 2
        %808 = vperm.xlu0 %807, %v706
        %v809 = vpop.permute.xlu0 %808
        %v811 = vmul.f32 %v797, %v695
        %v812 = vmul.f32 %v797, %v696
        %v813 = vmul.f32 %v801, %v697
        %v814 = vmul.f32 %v801, %v698
        %v815 = vmul.f32 %v805, %v699
        %v816 = vmul.f32 %v805, %v700
        %v817 = vmul.f32 %v809, %v701
        %v818 = vmul.f32 %v809, %v702
        %v819 = vadd.f32 %v811, %v813
        %v820 = vadd.f32 %v819, %v815
        %v821 = vadd.f32 %v820, %v817
        %v822 = vrot.slane %v821, 4
        %v823 = vadd.f32 %v821, %v822
        %v824 = vrot.slane %v823, 2
        %v825 = vadd.f32 %v823, %v824
        %v826 = vrot.slane %v825, 1
        %v827 = vadd.f32 %v825, %v826
        %v828 = vadd.f32 %v812, %v814
        %v829 = vadd.f32 %v828, %v816
        %v830 = vadd.f32 %v829, %v818
        %v831 = vrot.slane %v830, 4
        %v832 = vadd.f32 %v830, %v831
        %v833 = vrot.slane %v832, 2
        %v834 = vadd.f32 %v832, %v833
        %v835 = vrot.slane %v834, 1
        %v836 = vadd.f32 %v834, %v835
        %837 = vset.pattern.permute.xlu0 3
        %838 = vperm.xlu0 %837, %v703
        %v839 = vpop.permute.xlu0 %838
        %841 = vset.pattern.permute.xlu0 3
        %842 = vperm.xlu0 %841, %v704
        %v843 = vpop.permute.xlu0 %842
        %845 = vset.pattern.permute.xlu0 3
        %846 = vperm.xlu0 %845, %v705
        %v847 = vpop.permute.xlu0 %846
        %849 = vset.pattern.permute.xlu0 3
        %850 = vperm.xlu0 %849, %v706
        %v851 = vpop.permute.xlu0 %850
        %v853 = vmul.f32 %v839, %v695
        %v854 = vmul.f32 %v839, %v696
        %v855 = vmul.f32 %v843, %v697
        %v856 = vmul.f32 %v843, %v698
        %v857 = vmul.f32 %v847, %v699
        %v858 = vmul.f32 %v847, %v700
        %v859 = vmul.f32 %v851, %v701
        %v860 = vmul.f32 %v851, %v702
        %v861 = vadd.f32 %v853, %v855
        %v862 = vadd.f32 %v861, %v857
        %v863 = vadd.f32 %v862, %v859
        %v864 = vrot.slane %v863, 4
        %v865 = vadd.f32 %v863, %v864
        %v866 = vrot.slane %v865, 2
        %v867 = vadd.f32 %v865, %v866
        %v868 = vrot.slane %v867, 1
        %v869 = vadd.f32 %v867, %v868
        %v870 = vadd.f32 %v854, %v856
        %v871 = vadd.f32 %v870, %v858
        %v872 = vadd.f32 %v871, %v860
        %v873 = vrot.slane %v872, 4
        %v874 = vadd.f32 %v872, %v873
        %v875 = vrot.slane %v874, 2
        %v876 = vadd.f32 %v874, %v875
        %v877 = vrot.slane %v876, 1
        %v878 = vadd.f32 %v876, %v877
        %vm879 = vcmask 1040384
        %v880 = vsel %vm879, %v743, %v785
        %v881 = vsel %vm879, %v752, %v794
        %vm882 = vcmask 1041408
        %v883 = vsel %vm882, %v880, %v827
        %v884 = vsel %vm882, %v881, %v836
        %vm885 = vcmask 1042432
        %v886 = vsel %vm885, %v883, %v869
        %v887 = vsel %vm885, %v884, %v878
        %v888 = vld [vmem:[%s6] sm:$0xf]
        %890 = vset.pattern.permute.xlu0 0
        %891 = vperm.xlu0 %890, %v888
        %v892 = vpop.permute.xlu0 %891
        %v894 = vadd.f32 %v886, %v892
        %v895 = vadd.f32 %v887, %v892
        %v896 = vstv %s384
        %v897 = vmul.f32 %v896, %v395
        %v898 = vstv %s386
        %v899 = vmul.f32 %v898, %v894
        %v900 = vmul.f32 %v898, %v895
        %v903 = vcombine.low %v899, %v900
        %v905 = vadd.f32 %v897, %v903
        %v906 = vsub.f32 %v905, %v391
        %v907 = vld [vmem:[#allocation2] sm:$0x1]
        %v908 = vmul.f32 %v906, %v906
        %v910 = vcombine.high %v908, %v908
        %vm912 = vcmask 1043456
        %v913 = vsel %vm912, %v908, 0.0
        %v914 = vsel %vm912, %v910, 0.0
        %v915 = vadd.f32 %v913, %v914
        %916 = vadd.xlane.f32.xlu0 %v915
        %v917 = vpop.xlane.xlu0 %916
        %v918 = vrot.slane %v917, 4
        %v919 = vadd.f32 %v917, %v918
        %v920 = vrot.slane %v919, 2
        %v921 = vadd.f32 %v919, %v920
        %v922 = vrot.slane %v921, 1
        %v923 = vadd.f32 %v921, %v922
        %s924 = vtos %v923
        %v925 = vstv %s924
        %v926 = vadd.f32 %v907, %v925
        %vm927 = vcmask 0
        %928 = vst.msk [vmem:[#allocation2] sm:$0x1] %vm927, %v926
        // Predicated region
        $region57: #{tpu_custom_call.1} parent=47 // pred_check
          %p929 = pneg %p375
        $region58: #{tpu_custom_call.1} parent=47 // pred_check_branch
          %931 = sbr.rel (%p929) target = $region60
        $region59: #{tpu_custom_call.1} parent=47 // pred_region
          %s932 = sadd.s32 %s381, 4
          %s933 = sld [smem:[#allocation3 + %s932]]
          %v934 = vld [vmem:[#allocation2] sm:$0x1]
          %v935 = vstv %s933
          %v936 = vmul.f32 %v934, %v935
          %v938 = vlaneseq
          %v939 = vshrl.u32 %v938, 7
          %v940 = vsub.s32 0, %v939
          %v941 = vrot.slane %v936, %v940
          %942 = vset.pattern.permute.xlu0 0
          %943 = vperm.xlu0 %942, %v941
          %v944 = vpop.permute.xlu0 %943
          %946 = vst [vmem:[%s349] sm:$0xff] %v944
        $region60: #{tpu_custom_call.1} parent=47 // pred_fallthru
          _
        %s947 = sand.u32 %s208, 1
        %s948 = scalar_lea.sflag [#allocation4], %s947
        %s949 = sand.u32 %s208, 1
        %s950 = smul.addr %s949, 8
        %s951 = scalar_lea.vmem [#allocation6], %s950
        // Predicated region
        $region61: #{tpu_custom_call.1} parent=47 // pred_check
          %p952 = pneg %p218
        $region62: #{tpu_custom_call.1} parent=47 // pred_check_branch
          %954 = sbr.rel (%p952) target = $region64
        $region63: #{tpu_custom_call.1} parent=47 // pred_region
          %s956 = ssub.s32 128, 128
          %957 = vsyncadd %s948, %s956
          %s958 = smul.addr %s26, 128
          %s959 = scalar_lea.hbm %s7, %s958
          %s961 = sshll.u32 %s951, 4
          %s962 = int_to_ptr.vmem [resolvable:$true] %s961
          %964 = dma.vmem_to_hbm [thread:$0]  %s962, 128, %s959, %s948
        $region64: #{tpu_custom_call.1} parent=47 // pred_fallthru
          _
      $region48: #{tpu_custom_call.1} parent=5 // pred_fallthru
        _
      %p965 = scmp.le.s32.totalorder 2, %s17
      // Predicated region
      $region65: #{tpu_custom_call.1} parent=5 // pred_check
        %p966 = pneg %p965
      $region66: #{tpu_custom_call.1} parent=5 // pred_check_branch
        %968 = sbr.rel (%p966) target = $region68
      $region67: #{tpu_custom_call.1} parent=5 // pred_region
        %s969 = ssub.s32 %s17, 2
        // Predicated region
        $region69: #{tpu_custom_call.1} parent=67 // pred_check
          %p970 = pneg %p224
        $region70: #{tpu_custom_call.1} parent=67 // pred_check_branch
          %972 = sbr.rel (%p970) target = $region72
        $region71: #{tpu_custom_call.1} parent=67 // pred_region
          %s973 = sand.u32 %s209, 1
          %s974 = scalar_lea.sflag [#allocation4], %s973
          %s975 = sand.u32 %s209, 1
          %s976 = smul.addr %s975, 8
          %s977 = scalar_lea.vmem [#allocation6], %s976
          %978 = dma.done %s974, 128
        $region72: #{tpu_custom_call.1} parent=67 // pred_fallthru
          _
      $region68: #{tpu_custom_call.1} parent=5 // pred_fallthru
        _
    $region6: #{tpu_custom_call.1} parent=1 // loop_footer
      %s21 = sadd.s32 1, %s17
    $region7: #{tpu_custom_call.1} parent=1 // loop_footer_branch
      %16 = sbr.rel target = $region3
    $region8: #{tpu_custom_call.1} parent=1 // loop_exit
      _
    %979 = vsyncpa [#allocation4], 1
    %s980 = scalar_lea.sflag [#allocation4], 1
    %981 = vsyncpa %s980, 1
    %982 = vsyncpa [#allocation5], 1
    %s983 = scalar_lea.sflag [#allocation5], 1
    %984 = vsyncpa %s983, 1

</llo_original>
